<compile_context>
chip_gen: v7x
topology: tpu7x:2x2x1
jax: 0.10.0
libtpu: 0.0.40
codegen_flags: <defaults>
</compile_context>

<pallas_src>
import jax
import jax.numpy as jnp
import numpy as np
from jax.experimental import pallas as pl
from jax.experimental.pallas import tpu as pltpu

OUTPUT_DIM = 64   # target vocabulary size
EMB_DIM    = 32
ENC_HID    = 16   # encoder is bidirectional -> encoder feature dim = 2*ENC_HID = 32
DEC_HID    = 32
BATCH      = 4
SRC_LEN    = 8


def _decoder_kernel(ids_ref, h_ref, enc_ref, emb_ref,
                    gru_w_ref, gru_b_ref,
                    attn_w_ref, attn_b_ref, attn_v_ref,
                    fc_w_ref, fc_b_ref,
                    pred_ref, hnew_ref, attn_ref):
    h = h_ref[...]                              # [B, H]
    B, H = h.shape
    enc = enc_ref[...]                          # [B, S, E2]
    S, E2 = enc.shape[1], enc.shape[2]

    # ---- embedding gather fused in-kernel (ids live in SMEM) ----
    # TODO(synk): nn.Dropout train-mode random masking not implemented (eval-mode identity).
    rows = [emb_ref[pl.ds(ids_ref[b], 1), :] for b in range(B)]
    x = jnp.concatenate(rows, axis=0)           # [B, EMB]

    # ---- single-step GRU cell: one block-diagonal matmul yields [gi | gh] ----
    # (weights pre-transposed at init; PyTorch gate order: reset, update, new)
    xh = jnp.concatenate([x, h], axis=-1)       # [B, EMB+H]
    g = jnp.dot(xh, gru_w_ref[...], preferred_element_type=jnp.float32) + gru_b_ref[...]
    gi, gh = g[:, :3 * H], g[:, 3 * H:]
    r = jax.nn.sigmoid(gi[:, 0:H] + gh[:, 0:H])
    z = jax.nn.sigmoid(gi[:, H:2 * H] + gh[:, H:2 * H])
    n = jnp.tanh(gi[:, 2 * H:3 * H] + r * gh[:, 2 * H:3 * H])
    h_new = (1.0 - z) * n + z * h               # [B, H] (== rnn "output" for 1 step)
    hnew_ref[...] = h_new

    # ---- Bahdanau attention: flat [B*S, .] layout, reductions routed through the MXU ----
    enc_flat = enc.reshape(B * S, E2)                                      # [B*S, E2]
    h_rep = jnp.broadcast_to(h_new[:, None, :], (B, S, H)).reshape(B * S, H)
    he = jnp.concatenate([h_rep, enc_flat], axis=-1)                       # [B*S, H+E2]
    energy = jnp.tanh(jnp.dot(he, attn_w_ref[...],
                              preferred_element_type=jnp.float32)
                      + attn_b_ref[...])                                   # [B*S, D]
    scores = jnp.dot(energy, attn_v_ref[...],
                     preferred_element_type=jnp.float32).reshape(B, S)     # [B, S]

    m = jnp.max(scores, axis=-1, keepdims=True)
    e = jnp.exp(scores - m)
    denom = jnp.sum(e, axis=-1, keepdims=True)
    inv = pl.reciprocal(denom, approx=True)     # EUP reciprocal
    inv = inv * (2.0 - denom * inv)             # one Newton step -> ~f32 accuracy
    a = e * inv                                 # [B, S]
    attn_ref[...] = a

    # attended = sum_s a[b,s] * enc[b,s,:]  -- batched matmul on the MXU
    attended = jnp.einsum('bqs,bse->bqe', a[:, None, :], enc,
                          preferred_element_type=jnp.float32).reshape(B, E2)

    # ---- fc_out on cat([rnn_output, attended_feature]) : one stacked matmul ----
    ha = jnp.concatenate([h_new, attended], axis=-1)                       # [B, H+E2]
    pred_ref[...] = (jnp.dot(ha, fc_w_ref[...], preferred_element_type=jnp.float32)
                     + fc_b_ref[...])


def init_params(key):
    """Logical (PyTorch-layout) parameters, used by the pure-JAX reference."""
    ks = jax.random.split(key, 12)
    s = 0.1
    return {
        "embedding": jax.random.normal(ks[0], (OUTPUT_DIM, EMB_DIM), jnp.float32) * s,
        # GRU: weight_ih [3H, EMB], weight_hh [3H, H], biases stored [1, 3H]
        "w_ih": jax.random.normal(ks[1], (3 * DEC_HID, EMB_DIM), jnp.float32) * s,
        "w_hh": jax.random.normal(ks[2], (3 * DEC_HID, DEC_HID), jnp.float32) * s,
        "b_ih": jax.random.normal(ks[3], (1, 3 * DEC_HID), jnp.float32) * s,
        "b_hh": jax.random.normal(ks[4], (1, 3 * DEC_HID), jnp.float32) * s,
        # attention Linear(2*ENC_HID + DEC_HID, DEC_HID); cat order = (hidden, enc_outputs)
        "wa_h": jax.random.normal(ks[5], (DEC_HID, DEC_HID), jnp.float32) * s,
        "wa_e": jax.random.normal(ks[6], (DEC_HID, 2 * ENC_HID), jnp.float32) * s,
        "b_a":  jax.random.normal(ks[7], (1, DEC_HID), jnp.float32) * s,
        "v":    jax.random.normal(ks[8], (1, DEC_HID), jnp.float32) * s,   # Linear(DEC_HID,1,bias=False)
        # fc_out Linear(2*ENC_HID + DEC_HID, OUTPUT_DIM); cat order = (rnn_output, attended)
        "wf_h": jax.random.normal(ks[9], (OUTPUT_DIM, DEC_HID), jnp.float32) * s,
        "wf_a": jax.random.normal(ks[10], (OUTPUT_DIM, 2 * ENC_HID), jnp.float32) * s,
        "b_f":  jax.random.normal(ks[11], (1, OUTPUT_DIM), jnp.float32) * s,
    }


def pack_params(p):
    """One-time packing: pre-transpose + fuse weights into the slabs the kernel consumes."""
    H, EMB, E2 = DEC_HID, EMB_DIM, 2 * ENC_HID
    # Block-diagonal GRU weight so [x ; h] @ W -> [gi | gh] in a single matmul.
    gru_w = jnp.zeros((EMB + H, 6 * H), jnp.float32)
    gru_w = gru_w.at[:EMB, :3 * H].set(p["w_ih"].T)
    gru_w = gru_w.at[EMB:, 3 * H:].set(p["w_hh"].T)
    gru_b = jnp.concatenate([p["b_ih"], p["b_hh"]], axis=-1)          # [1, 6H]
    attn_w = jnp.concatenate([p["wa_h"].T, p["wa_e"].T], axis=0)      # [H+E2, D]
    attn_v = p["v"].T                                                 # [D, 1] (pre-transposed)
    fc_w = jnp.concatenate([p["wf_h"].T, p["wf_a"].T], axis=0)        # [H+E2, V]
    return {
        "emb": p["embedding"], "gru_w": gru_w, "gru_b": gru_b,
        "attn_w": attn_w, "attn_b": p["b_a"], "attn_v": attn_v,
        "fc_w": fc_w, "fc_b": p["b_f"],
    }


def decoder_forward(input_ids, hidden, encoder_outputs, packed):
    """input_ids: [B] int32, hidden: [B, DEC_HID], encoder_outputs: [S, B, 2*ENC_HID]."""
    # Layout change done once per call in the wrapper (would be once per sequence in a loop).
    enc_bse = jnp.transpose(encoder_outputs, (1, 0, 2))    # [B, S, 2*ENC_HID]
    B = hidden.shape[0]
    S = enc_bse.shape[1]

    smem = pl.BlockSpec(memory_space=pltpu.MemorySpace.SMEM)
    vmem = lambda: pl.BlockSpec(memory_space=pltpu.MemorySpace.VMEM)

    pred, h_new, a = pl.pallas_call(
        _decoder_kernel,
        out_shape=(
            jax.ShapeDtypeStruct((B, OUTPUT_DIM), jnp.float32),
            jax.ShapeDtypeStruct((B, DEC_HID), jnp.float32),
            jax.ShapeDtypeStruct((B, S), jnp.float32),
        ),
        in_specs=[smem] + [vmem() for _ in range(10)],
        out_specs=(vmem(), vmem(), vmem()),
    )(input_ids.astype(jnp.int32), hidden, enc_bse,
      packed["emb"], packed["gru_w"], packed["gru_b"],
      packed["attn_w"], packed["attn_b"], packed["attn_v"],
      packed["fc_w"], packed["fc_b"])

    prediction = pred[None]            # [1, B, OUTPUT_DIM] like PyTorch
    return prediction, h_new, a


def decoder_reference(input_ids, hidden, encoder_outputs, params):
    """Pure-JAX reference with identical semantics (for correctness checking)."""
    x = params["embedding"][input_ids]
    h = hidden
    H = DEC_HID
    gi = x @ params["w_ih"].T + params["b_ih"][0]
    gh = h @ params["w_hh"].T + params["b_hh"][0]
    r = jax.nn.sigmoid(gi[:, :H] + gh[:, :H])
    z = jax.nn.sigmoid(gi[:, H:2 * H] + gh[:, H:2 * H])
    n = jnp.tanh(gi[:, 2 * H:] + r * gh[:, 2 * H:])
    h_new = (1.0 - z) * n + z * h

    enc = jnp.transpose(encoder_outputs, (1, 0, 2))        # [B, S, E2]
    energy = jnp.tanh(jnp.einsum("bd,ed->be", h_new, params["wa_h"])[:, None, :]
                      + jnp.einsum("bse,de->bsd", enc, params["wa_e"])
                      + params["b_a"][0])
    scores = jnp.einsum("bsd,d->bs", energy, params["v"][0])
    a = jax.nn.softmax(scores, axis=-1)
    attended = jnp.einsum("bs,bse->be", a, enc)
    pred = h_new @ params["wf_h"].T + attended @ params["wf_a"].T + params["b_f"][0]
    return pred[None], h_new, a


if __name__ == "__main__":
    key = jax.random.PRNGKey(0)
    k_p, k_in, k_h, k_e = jax.random.split(key, 4)

    params = init_params(k_p)
    packed = pack_params(params)
    input_ids = jax.random.randint(k_in, (BATCH,), 0, OUTPUT_DIM, dtype=jnp.int32)
    hidden = jax.random.normal(k_h, (BATCH, DEC_HID), jnp.float32)
    encoder_outputs = jax.random.normal(k_e, (SRC_LEN, BATCH, 2 * ENC_HID), jnp.float32)

    pred, h_new, a = decoder_forward(input_ids, hidden, encoder_outputs, packed)
    jax.block_until_ready((pred, h_new, a))

    pred_r, h_r, a_r = decoder_reference(input_ids, hidden, encoder_outputs, params)
    # 1e-4 tolerance: fused/block-diag matmul accumulation order + EUP reciprocal (Newton-refined).
    np.testing.assert_allclose(np.asarray(pred), np.asarray(pred_r), atol=1e-4, rtol=1e-4)
    np.testing.assert_allclose(np.asarray(h_new), np.asarray(h_r), atol=1e-4, rtol=1e-4)
    np.testing.assert_allclose(np.asarray(a), np.asarray(a_r), atol=1e-4, rtol=1e-4)
    np.testing.assert_allclose(np.asarray(a).sum(-1), np.ones((BATCH,)), atol=1e-4, rtol=1e-4)

    assert pred.shape == (1, BATCH, OUTPUT_DIM)
    assert h_new.shape == (BATCH, DEC_HID)
    assert a.shape == (BATCH, SRC_LEN)
    print("KERNEL_OK")
</pallas_src>

<mosaic_0001>
module attributes {stable_mosaic.version = 11 : i64} {
  func.func @_decoder_kernel(%arg0: memref<4xi32, #tpu.memory_space<smem>>, %arg1: memref<4x32xf32, #tpu.memory_space<vmem>>, %arg2: memref<4x8x32xf32, #tpu.memory_space<vmem>>, %arg3: memref<64x32xf32, #tpu.memory_space<vmem>>, %arg4: memref<64x192xf32, #tpu.memory_space<vmem>>, %arg5: memref<1x192xf32, #tpu.memory_space<vmem>>, %arg6: memref<64x32xf32, #tpu.memory_space<vmem>>, %arg7: memref<1x32xf32, #tpu.memory_space<vmem>>, %arg8: memref<32x1xf32, #tpu.memory_space<vmem>>, %arg9: memref<64x64xf32, #tpu.memory_space<vmem>>, %arg10: memref<1x64xf32, #tpu.memory_space<vmem>>, %arg11: memref<4x64xf32, #tpu.memory_space<vmem>>, %arg12: memref<4x32xf32, #tpu.memory_space<vmem>>, %arg13: memref<4x8xf32, #tpu.memory_space<vmem>>) attributes {dimension_semantics = [], scalar_prefetch = 0 : i64, scratch_operands = 0 : i64, tpu.core_type = #tpu.core_type<tc>} {
    %c0 = arith.constant 0 : index
    %c0_0 = arith.constant 0 : index
    %0 = vector.load %arg1[%c0, %c0_0] : memref<4x32xf32, #tpu.memory_space<vmem>>, vector<4x32xf32>
    %c0_1 = arith.constant 0 : index
    %c0_2 = arith.constant 0 : index
    %c0_3 = arith.constant 0 : index
    %1 = vector.load %arg2[%c0_1, %c0_2, %c0_3] : memref<4x8x32xf32, #tpu.memory_space<vmem>>, vector<4x8x32xf32>
    %c0_4 = arith.constant 0 : index
    %2 = memref.load %arg0[%c0_4] : memref<4xi32, #tpu.memory_space<smem>>
    %3 = arith.index_cast %2 : i32 to index
    %c0_5 = arith.constant 0 : index
    %4 = vector.load %arg3[%3, %c0_5] : memref<64x32xf32, #tpu.memory_space<vmem>>, vector<1x32xf32>
    %c1 = arith.constant 1 : index
    %5 = memref.load %arg0[%c1] : memref<4xi32, #tpu.memory_space<smem>>
    %6 = arith.index_cast %5 : i32 to index
    %c0_6 = arith.constant 0 : index
    %7 = vector.load %arg3[%6, %c0_6] : memref<64x32xf32, #tpu.memory_space<vmem>>, vector<1x32xf32>
    %c2 = arith.constant 2 : index
    %8 = memref.load %arg0[%c2] : memref<4xi32, #tpu.memory_space<smem>>
    %9 = arith.index_cast %8 : i32 to index
    %c0_7 = arith.constant 0 : index
    %10 = vector.load %arg3[%9, %c0_7] : memref<64x32xf32, #tpu.memory_space<vmem>>, vector<1x32xf32>
    %c3 = arith.constant 3 : index
    %11 = memref.load %arg0[%c3] : memref<4xi32, #tpu.memory_space<smem>>
    %12 = arith.index_cast %11 : i32 to index
    %c0_8 = arith.constant 0 : index
    %13 = vector.load %arg3[%12, %c0_8] : memref<64x32xf32, #tpu.memory_space<vmem>>, vector<1x32xf32>
    %14 = tpu.concatenate %4, %7, %10, %13 in 0 : vector<1x32xf32>, vector<1x32xf32>, vector<1x32xf32>, vector<1x32xf32> -> vector<4x32xf32>
    %15 = tpu.concatenate %14, %0 in 1 : vector<4x32xf32>, vector<4x32xf32> -> vector<4x64xf32>
    %c0_9 = arith.constant 0 : index
    %c0_10 = arith.constant 0 : index
    %16 = vector.load %arg4[%c0_9, %c0_10] : memref<64x192xf32, #tpu.memory_space<vmem>>, vector<64x192xf32>
    %cst = arith.constant dense<0.000000e+00> : vector<4x192xf32>
    %17 = tpu.matmul %15, %16, %cst {dimension_numbers = #tpu.dot_dimension_numbers<[1], [0], [0], [1], [0, 0, 1, 1], [], []>} : vector<4x64xf32>, vector<64x192xf32>, vector<4x192xf32> -> vector<4x192xf32>
    %c0_11 = arith.constant 0 : index
    %c0_12 = arith.constant 0 : index
    %18 = vector.load %arg5[%c0_11, %c0_12] : memref<1x192xf32, #tpu.memory_space<vmem>>, vector<1x192xf32>
    %19 = vector.broadcast %18 : vector<1x192xf32> to vector<4x192xf32>
    %20 = arith.addf %17, %19 : vector<4x192xf32>
    %21 = vector.extract_strided_slice %20 {offsets = [0, 0], sizes = [4, 96], strides = [1, 1]} : vector<4x192xf32> to vector<4x96xf32>
    %22 = vector.extract_strided_slice %20 {offsets = [0, 96], sizes = [4, 96], strides = [1, 1]} : vector<4x192xf32> to vector<4x96xf32>
    %23 = vector.extract_strided_slice %21 {offsets = [0, 0], sizes = [4, 32], strides = [1, 1]} : vector<4x96xf32> to vector<4x32xf32>
    %24 = vector.extract_strided_slice %22 {offsets = [0, 0], sizes = [4, 32], strides = [1, 1]} : vector<4x96xf32> to vector<4x32xf32>
    %25 = arith.addf %23, %24 : vector<4x32xf32>
    %26 = arith.negf %25 : vector<4x32xf32>
    %27 = math.exp %26 : vector<4x32xf32>
    %cst_13 = arith.constant 1.000000e+00 : f32
    %28 = vector.broadcast %cst_13 : f32 to vector<4x32xf32>
    %29 = arith.addf %28, %27 : vector<4x32xf32>
    %30 = arith.divf %28, %29 : vector<4x32xf32>
    %31 = vector.extract_strided_slice %21 {offsets = [0, 32], sizes = [4, 32], strides = [1, 1]} : vector<4x96xf32> to vector<4x32xf32>
    %32 = vector.extract_strided_slice %22 {offsets = [0, 32], sizes = [4, 32], strides = [1, 1]} : vector<4x96xf32> to vector<4x32xf32>
    %33 = arith.addf %31, %32 : vector<4x32xf32>
    %34 = arith.negf %33 : vector<4x32xf32>
    %35 = math.exp %34 : vector<4x32xf32>
    %cst_14 = arith.constant 1.000000e+00 : f32
    %36 = vector.broadcast %cst_14 : f32 to vector<4x32xf32>
    %37 = arith.addf %36, %35 : vector<4x32xf32>
    %38 = arith.divf %36, %37 : vector<4x32xf32>
    %39 = vector.extract_strided_slice %21 {offsets = [0, 64], sizes = [4, 32], strides = [1, 1]} : vector<4x96xf32> to vector<4x32xf32>
    %40 = vector.extract_strided_slice %22 {offsets = [0, 64], sizes = [4, 32], strides = [1, 1]} : vector<4x96xf32> to vector<4x32xf32>
    %41 = arith.mulf %30, %40 : vector<4x32xf32>
    %42 = arith.addf %39, %41 : vector<4x32xf32>
    %43 = math.tanh %42 : vector<4x32xf32>
    %cst_15 = arith.constant 1.000000e+00 : f32
    %44 = vector.broadcast %cst_15 : f32 to vector<4x32xf32>
    %45 = arith.subf %44, %38 : vector<4x32xf32>
    %46 = arith.mulf %45, %43 : vector<4x32xf32>
    %47 = arith.mulf %38, %0 : vector<4x32xf32>
    %48 = arith.addf %46, %47 : vector<4x32xf32>
    %c0_16 = arith.constant 0 : index
    %c0_17 = arith.constant 0 : index
    %49 = vector.load %arg12[%c0_16, %c0_17] : memref<4x32xf32, #tpu.memory_space<vmem>>, vector<4x32xf32>
    tpu.vector_store %arg12[%c0_16, %c0_17], %48 {strides = array<i32>} : memref<4x32xf32, #tpu.memory_space<vmem>>, vector<4x32xf32>,
    %50 = vector.shape_cast %1 : vector<4x8x32xf32> to vector<32x32xf32>
    %51 = vector.shape_cast %48 : vector<4x32xf32> to vector<4x1x32xf32>
    %52 = vector.shape_cast %51 : vector<4x1x32xf32> to vector<4x1x32xf32>
    %53 = vector.broadcast %52 : vector<4x1x32xf32> to vector<4x8x32xf32>
    %54 = vector.shape_cast %53 : vector<4x8x32xf32> to vector<32x32xf32>
    %55 = tpu.concatenate %54, %50 in 1 : vector<32x32xf32>, vector<32x32xf32> -> vector<32x64xf32>
    %c0_18 = arith.constant 0 : index
    %c0_19 = arith.constant 0 : index
    %56 = vector.load %arg6[%c0_18, %c0_19] : memref<64x32xf32, #tpu.memory_space<vmem>>, vector<64x32xf32>
    %cst_20 = arith.constant dense<0.000000e+00> : vector<32x32xf32>
    %57 = tpu.matmul %55, %56, %cst_20 {dimension_numbers = #tpu.dot_dimension_numbers<[1], [0], [0], [1], [0, 0, 1, 1], [], []>} : vector<32x64xf32>, vector<64x32xf32>, vector<32x32xf32> -> vector<32x32xf32>
    %c0_21 = arith.constant 0 : index
    %c0_22 = arith.constant 0 : index
    %58 = vector.load %arg7[%c0_21, %c0_22] : memref<1x32xf32, #tpu.memory_space<vmem>>, vector<1x32xf32>
    %59 = vector.broadcast %58 : vector<1x32xf32> to vector<32x32xf32>
    %60 = arith.addf %57, %59 : vector<32x32xf32>
    %61 = math.tanh %60 : vector<32x32xf32>
    %c0_23 = arith.constant 0 : index
    %c0_24 = arith.constant 0 : index
    %62 = vector.load %arg8[%c0_23, %c0_24] : memref<32x1xf32, #tpu.memory_space<vmem>>, vector<32x1xf32>
    %cst_25 = arith.constant dense<0.000000e+00> : vector<32x1xf32>
    %63 = tpu.matmul %61, %62, %cst_25 {dimension_numbers = #tpu.dot_dimension_numbers<[1], [0], [0], [1], [0, 0, 1, 1], [], []>} : vector<32x32xf32>, vector<32x1xf32>, vector<32x1xf32> -> vector<32x1xf32>
    %64 = vector.shape_cast %63 : vector<32x1xf32> to vector<4x8xf32>
    %cst_26 = arith.constant dense<0xFF800000> : vector<4xf32>
    %65 = vector.multi_reduction <maximumf>, %64, %cst_26 [1] : vector<4x8xf32> to vector<4xf32>
    %66 = vector.shape_cast %65 : vector<4xf32> to vector<4x1xf32>
    %67 = vector.broadcast %66 : vector<4x1xf32> to vector<4x8xf32>
    %68 = arith.subf %64, %67 : vector<4x8xf32>
    %69 = math.exp %68 : vector<4x8xf32>
    %cst_27 = arith.constant dense<0.000000e+00> : vector<4xf32>
    %70 = vector.multi_reduction <add>, %69, %cst_27 [1] : vector<4x8xf32> to vector<4xf32>
    %71 = vector.shape_cast %70 : vector<4xf32> to vector<4x1xf32>
    %72 = tpu.reciprocal %71 {approx = true} : vector<4x1xf32> -> vector<4x1xf32>
    %73 = arith.mulf %71, %72 : vector<4x1xf32>
    %cst_28 = arith.constant 2.000000e+00 : f32
    %74 = vector.broadcast %cst_28 : f32 to vector<4x1xf32>
    %75 = arith.subf %74, %73 : vector<4x1xf32>
    %76 = arith.mulf %72, %75 : vector<4x1xf32>
    %77 = vector.broadcast %76 : vector<4x1xf32> to vector<4x8xf32>
    %78 = arith.mulf %69, %77 : vector<4x8xf32>
    %c0_29 = arith.constant 0 : index
    %c0_30 = arith.constant 0 : index
    %79 = vector.load %arg13[%c0_29, %c0_30] : memref<4x8xf32, #tpu.memory_space<vmem>>, vector<4x8xf32>
    tpu.vector_store %arg13[%c0_29, %c0_30], %78 {strides = array<i32>} : memref<4x8xf32, #tpu.memory_space<vmem>>, vector<4x8xf32>,
    %80 = vector.shape_cast %78 : vector<4x8xf32> to vector<4x1x8xf32>
    "tpu.trace_start"() <{level = 10 : i32, message = "bqs,bse->bqe"}> : () -> ()
    %cst_31 = arith.constant dense<0.000000e+00> : vector<4x1x32xf32>
    %81 = tpu.matmul %80, %1, %cst_31 {dimension_numbers = #tpu.dot_dimension_numbers<[2], [1], [1], [2], [0, 0, 0, 1, 1, 2], [0], [0]>} : vector<4x1x8xf32>, vector<4x8x32xf32>, vector<4x1x32xf32> -> vector<4x1x32xf32>
    "tpu.trace_stop"() : () -> ()
    %82 = vector.shape_cast %81 : vector<4x1x32xf32> to vector<4x32xf32>
    %83 = tpu.concatenate %48, %82 in 1 : vector<4x32xf32>, vector<4x32xf32> -> vector<4x64xf32>
    %c0_32 = arith.constant 0 : index
    %c0_33 = arith.constant 0 : index
    %84 = vector.load %arg9[%c0_32, %c0_33] : memref<64x64xf32, #tpu.memory_space<vmem>>, vector<64x64xf32>
    %cst_34 = arith.constant dense<0.000000e+00> : vector<4x64xf32>
    %85 = tpu.matmul %83, %84, %cst_34 {dimension_numbers = #tpu.dot_dimension_numbers<[1], [0], [0], [1], [0, 0, 1, 1], [], []>} : vector<4x64xf32>, vector<64x64xf32>, vector<4x64xf32> -> vector<4x64xf32>
    %c0_35 = arith.constant 0 : index
    %c0_36 = arith.constant 0 : index
    %86 = vector.load %arg10[%c0_35, %c0_36] : memref<1x64xf32, #tpu.memory_space<vmem>>, vector<1x64xf32>
    %87 = vector.broadcast %86 : vector<1x64xf32> to vector<4x64xf32>
    %88 = arith.addf %85, %87 : vector<4x64xf32>
    %c0_37 = arith.constant 0 : index
    %c0_38 = arith.constant 0 : index
    %89 = vector.load %arg11[%c0_37, %c0_38] : memref<4x64xf32, #tpu.memory_space<vmem>>, vector<4x64xf32>
    tpu.vector_store %arg11[%c0_37, %c0_38], %88 {strides = array<i32>} : memref<4x64xf32, #tpu.memory_space<vmem>>, vector<4x64xf32>,
    return
  }
}

</mosaic_0001>

<llo_original>
// kernel: tpu_custom_call.1
$region0: #{tpu_custom_call.1}
  #allocation0 [shape = 'u32[]', space=smem, size = 0x4, offset = 0x4, fixed_abs, tag = 'smem constant byte address 0x4 - core index']
  #allocation1 [shape = 'u32[144,128]{1,0:T(1,128)}', space=vmem, size = 0x12000, scoped, tag = 'internal scratch']
  %s0 = inlined_call_operand.vmem [shape: s32[4], index: 0, kind: input, shape index: {}]
  %s1 = inlined_call_operand.vmem [shape: f32[4,32], index: 1, kind: input, shape index: {}]
  %s2 = inlined_call_operand.hbm [shape: f32[4,8,32], index: 2, kind: input, shape index: {}]
  %s3 = inlined_call_operand.vmem [shape: f32[64,32], index: 3, kind: input, shape index: {}]
  %s4 = inlined_call_operand.vmem [shape: f32[64,192], index: 4, kind: input, shape index: {}]
  %s5 = inlined_call_operand.vmem [shape: f32[1,192], index: 5, kind: input, shape index: {}]
  %s6 = inlined_call_operand.vmem [shape: f32[64,32], index: 6, kind: input, shape index: {}]
  %s7 = inlined_call_operand.vmem [shape: f32[1,32], index: 7, kind: input, shape index: {}]
  %s8 = inlined_call_operand.vmem [shape: f32[32,1], index: 8, kind: input, shape index: {}]
  %s9 = inlined_call_operand.vmem [shape: f32[64,64], index: 9, kind: input, shape index: {}]
  %s10 = inlined_call_operand.vmem [shape: f32[1,64], index: 10, kind: input, shape index: {}]
  %s11 = inlined_call_operand.hbm [shape: f32[4,64], index: 11, kind: output, shape index: {0}]
  %s12 = inlined_call_operand.hbm [shape: f32[4,32], index: 12, kind: output, shape index: {1}]
  %s13 = inlined_call_operand.hbm [shape: f32[4,8], index: 13, kind: output, shape index: {2}]
  %14 = xla_tuple %s11, %s12, %s13
  %s15 = sld [smem:[#allocation0]]
  $region78: #{tpu_custom_call.1} parent=0
    _
  %s17 = ssub.s32 1, %s15
  %s18 = scalar_select 0, %s17, %s15
  $region1: #{tpu_custom_call.1} parent=0
    #allocation2 [shape = 'u8[512]{0}', space=smem, size = 0x200, scoped, tag = 'input window, operand 0, single buffered']
    #allocation3 [shape = 's32[1]{0}', space=sflag, size = 0x4, scoped, tag = 'scoped memory for tpu_custom_call.1']
    #allocation4 [shape = 's32[1]{0}', space=sflag, size = 0x4, scoped, tag = 'scoped memory for tpu_custom_call.1']
    #allocation5 [shape = 's32[1]{0}', space=sflag, size = 0x4, scoped, tag = 'scoped memory for tpu_custom_call.1']
    #allocation6 [shape = 'u8[16384]{0}', space=vmem, size = 0x4000, scoped, tag = 'input window, operand 2, single buffered']
    #allocation7 [shape = 'u8[2048]{0}', space=vmem, size = 0x800, scoped, tag = 'output window, operand 0, single buffered']
    #allocation8 [shape = 'u8[2048]{0}', space=vmem, size = 0x800, scoped, tag = 'output window, operand 1, single buffered']
    #allocation9 [shape = 's32[1]{0}', space=sflag, size = 0x4, scoped, tag = 'scoped memory for tpu_custom_call.1']
    #allocation10 [shape = 'u8[2048]{0}', space=vmem, size = 0x800, scoped, tag = 'output window, operand 2, single buffered']
    %19 = vsyncpa [#allocation5], 0
    %20 = vsyncpa [#allocation3], 0
    %21 = vsyncpa [#allocation4], 0
    %22 = vsyncpa [#allocation9], 0
    // Predicated region
    $region2: #{tpu_custom_call.1} parent=1 // pred_check
      _
    $region3: #{tpu_custom_call.1} parent=1 // pred_check_branch
      %24 = sbr.rel (0) target = $region5
    $region4: #{tpu_custom_call.1} parent=1 // pred_region
      %s26 = ssub.s32 16, 16
      %27 = vsyncadd [#allocation5], %s26
      %s29 = sshll.u32 %s0, 4
      %s30 = int_to_ptr.vmem [resolvable:$true] %s29
      %32 = dma.vmem_to_smem %s30, 16, [#allocation2], [#allocation5]
    $region5: #{tpu_custom_call.1} parent=1 // pred_fallthru
      _
    // Predicated region
    $region6: #{tpu_custom_call.1} parent=1 // pred_check
      _
    $region7: #{tpu_custom_call.1} parent=1 // pred_check_branch
      %34 = sbr.rel (0) target = $region9
    $region8: #{tpu_custom_call.1} parent=1 // pred_region
      _
    $region9: #{tpu_custom_call.1} parent=1 // pred_fallthru
      _
    // Predicated region
    $region10: #{tpu_custom_call.1} parent=1 // pred_check
      _
    $region11: #{tpu_custom_call.1} parent=1 // pred_check_branch
      %36 = sbr.rel (0) target = $region13
    $region12: #{tpu_custom_call.1} parent=1 // pred_region
      %s38 = ssub.s32 512, 512
      %39 = vsyncadd [#allocation3], %s38
      %s40 = sshll.u32 [#allocation6], 4
      %s41 = int_to_ptr.vmem [resolvable:$true] %s40
      %46 = dma.hbm_to_vmem [thread:$0]  %s2, 512, %s41, [#allocation3], 128, 128, 8
    $region13: #{tpu_custom_call.1} parent=1 // pred_fallthru
      _
    // Predicated region
    $region14: #{tpu_custom_call.1} parent=1 // pred_check
      _
    $region15: #{tpu_custom_call.1} parent=1 // pred_check_branch
      %48 = sbr.rel (0) target = $region17
    $region16: #{tpu_custom_call.1} parent=1 // pred_region
      _
    $region17: #{tpu_custom_call.1} parent=1 // pred_fallthru
      _
    // Predicated region
    $region18: #{tpu_custom_call.1} parent=1 // pred_check
      _
    $region19: #{tpu_custom_call.1} parent=1 // pred_check_branch
      %50 = sbr.rel (0) target = $region21
    $region20: #{tpu_custom_call.1} parent=1 // pred_region
      _
    $region21: #{tpu_custom_call.1} parent=1 // pred_fallthru
      _
    // Predicated region
    $region22: #{tpu_custom_call.1} parent=1 // pred_check
      _
    $region23: #{tpu_custom_call.1} parent=1 // pred_check_branch
      %52 = sbr.rel (0) target = $region25
    $region24: #{tpu_custom_call.1} parent=1 // pred_region
      _
    $region25: #{tpu_custom_call.1} parent=1 // pred_fallthru
      _
    // Predicated region
    $region26: #{tpu_custom_call.1} parent=1 // pred_check
      _
    $region27: #{tpu_custom_call.1} parent=1 // pred_check_branch
      %54 = sbr.rel (0) target = $region29
    $region28: #{tpu_custom_call.1} parent=1 // pred_region
      _
    $region29: #{tpu_custom_call.1} parent=1 // pred_fallthru
      _
    // Predicated region
    $region30: #{tpu_custom_call.1} parent=1 // pred_check
      _
    $region31: #{tpu_custom_call.1} parent=1 // pred_check_branch
      %56 = sbr.rel (0) target = $region33
    $region32: #{tpu_custom_call.1} parent=1 // pred_region
      _
    $region33: #{tpu_custom_call.1} parent=1 // pred_fallthru
      _
    // Predicated region
    $region34: #{tpu_custom_call.1} parent=1 // pred_check
      _
    $region35: #{tpu_custom_call.1} parent=1 // pred_check_branch
      %58 = sbr.rel (0) target = $region37
    $region36: #{tpu_custom_call.1} parent=1 // pred_region
      _
    $region37: #{tpu_custom_call.1} parent=1 // pred_fallthru
      _
    // Predicated region
    $region38: #{tpu_custom_call.1} parent=1 // pred_check
      _
    $region39: #{tpu_custom_call.1} parent=1 // pred_check_branch
      %60 = sbr.rel (0) target = $region41
    $region40: #{tpu_custom_call.1} parent=1 // pred_region
      _
    $region41: #{tpu_custom_call.1} parent=1 // pred_fallthru
      _
    // Predicated region
    $region42: #{tpu_custom_call.1} parent=1 // pred_check
      _
    $region43: #{tpu_custom_call.1} parent=1 // pred_check_branch
      %62 = sbr.rel (0) target = $region45
    $region44: #{tpu_custom_call.1} parent=1 // pred_region
      _
    $region45: #{tpu_custom_call.1} parent=1 // pred_fallthru
      _
    // Predicated region
    $region46: #{tpu_custom_call.1} parent=1 // pred_check
      _
    $region47: #{tpu_custom_call.1} parent=1 // pred_check_branch
      %64 = sbr.rel (0) target = $region49
    $region48: #{tpu_custom_call.1} parent=1 // pred_region
      %65 = dma.done [#allocation5], 16
    $region49: #{tpu_custom_call.1} parent=1 // pred_fallthru
      _
    // Predicated region
    $region50: #{tpu_custom_call.1} parent=1 // pred_check
      _
    $region51: #{tpu_custom_call.1} parent=1 // pred_check_branch
      %67 = sbr.rel (0) target = $region53
    $region52: #{tpu_custom_call.1} parent=1 // pred_region
      %68 = dma.done [#allocation3], 512
    $region53: #{tpu_custom_call.1} parent=1 // pred_fallthru
      _
    %69 = sfence
    %v70 = vld [vmem:[%s1] sm:$0xf]
    %v71 = vld [vmem:[#allocation6] sm:$0xff]
    %v72 = vld [vmem:[#allocation6 + $0x8] sm:$0xff]
    %v73 = vld [vmem:[#allocation6 + $0x10] sm:$0xff]
    %v74 = vld [vmem:[#allocation6 + $0x18] sm:$0xff]
    %s75 = sld [smem:[#allocation2]]
    %s76 = scalar_lea.vmem %s3, %s75
    %v77 = vld [vmem:[%s76] sm:$0x1]
    %s78 = sld [smem:[#allocation2 + $0x1]]
    %s79 = scalar_lea.vmem %s3, %s78
    %v80 = vld [vmem:[%s79] sm:$0x1]
    %s81 = sld [smem:[#allocation2 + $0x2]]
    %s82 = scalar_lea.vmem %s3, %s81
    %v83 = vld [vmem:[%s82] sm:$0x1]
    %s84 = sld [smem:[#allocation2 + $0x3]]
    %s85 = scalar_lea.vmem %s3, %s84
    %v86 = vld [vmem:[%s85] sm:$0x1]
    %v88 = vrot.slane %v80, 7
    %v91 = vrot.slane %v83, 6
    %v94 = vrot.slane %v86, 5
    %vm96 = vcmask 1040384
    %v97 = vsel %vm96, %v77, %v88
    %vm98 = vcmask 1041408
    %v99 = vsel %vm98, %v97, %v91
    %vm100 = vcmask 1042432
    %v101 = vsel %vm100, %v99, %v94
    %103 = vrot.lane.b32.xlu0 %v70, 32
    %v104 = vpop.permute.xlu0 %103
    %vm106 = vcmask 261120
    %v107 = vsel %vm106, %v101, %v104
    %v108 = vld [vmem:[%s4] sm:$0xff]
    %v109 = vld [vmem:[%s4 + $0x8] sm:$0xff]
    %v110 = vld [vmem:[%s4 + $0x10] sm:$0xff]
    %v111 = vld [vmem:[%s4 + $0x18] sm:$0xff]
    %v112 = vld [vmem:[%s4 + $0x20] sm:$0xff]
    %v113 = vld [vmem:[%s4 + $0x28] sm:$0xff]
    %v114 = vld [vmem:[%s4 + $0x30] sm:$0xff]
    %v115 = vld [vmem:[%s4 + $0x38] sm:$0xff]
    %v116 = vld [vmem:[%s4 + $0x40] sm:$0xff]
    %v117 = vld [vmem:[%s4 + $0x48] sm:$0xff]
    %v118 = vld [vmem:[%s4 + $0x50] sm:$0xff]
    %v119 = vld [vmem:[%s4 + $0x58] sm:$0xff]
    %v120 = vld [vmem:[%s4 + $0x60] sm:$0xff]
    %v121 = vld [vmem:[%s4 + $0x68] sm:$0xff]
    %v122 = vld [vmem:[%s4 + $0x70] sm:$0xff]
    %v123 = vld [vmem:[%s4 + $0x78] sm:$0xff]
    %v124 = vld [vmem:[%s5] sm:$0x3]
    %v126 = vlaneseq
    %v127 = vshrl.u32 %v126, 7
    %v128 = vsub.s32 0, %v127
    %v129 = vrot.slane %v124, %v128
    %v130 = vlaneseq
    %v131 = vshrl.u32 %v130, 7
    %v132 = vsub.s32 1, %v131
    %v133 = vrot.slane %v124, %v132
    %vm136 = vcmask 523264
    %v138 = vsel %vm136, %v107, 0
    %140 = vmatprep.subr.mxu0 %v109
    %141 = vmatpush1.msra.mxu0 %v108
    %142 = vmatprep.subr.mxu0 %v111
    %143 = vmatpush1.msra.mxu0 %v110
    %144 = vmatprep.subr.mxu0 %v113
    %145 = vmatpush1.msra.mxu0 %v112
    %146 = vmatprep.subr.mxu0 %v115
    %147 = vmatpush1.msra.mxu0 %v114
    %148 = vmatprep.subr.mxu0 %v117
    %149 = vmatpush1.msra.mxu0 %v116
    %150 = vmatprep.subr.mxu0 %v119
    %151 = vmatpush1.msra.mxu0 %v118
    %152 = vmatprep.subr.mxu0 %v121
    %153 = vmatpush1.msra.mxu0 %v120
    %154 = vmatprep.subr.mxu0 %v123
    %155 = vmatpush1.msra.mxu0 %v122
    %156 = vmatprep.subr.mxu0 0.0
    %157 = vmatpush1.msra.mxu0 0.0
    %158 = vmatprep.subr.mxu0 0.0
    %159 = vmatpush1.msra.mxu0 0.0
    %160 = vmatprep.subr.mxu0 0.0
    %161 = vmatpush1.msra.mxu0 0.0
    %162 = vmatprep.subr.mxu0 0.0
    %163 = vmatpush1.msra.mxu0 0.0
    %164 = vmatprep.subr.mxu0 0.0
    %165 = vmatpush1.msra.mxu0 0.0
    %166 = vmatprep.subr.mxu0 0.0
    %167 = vmatpush1.msra.mxu0 0.0
    %168 = vmatprep.subr.mxu0 0.0
    %169 = vmatpush1.msra.mxu0 0.0
    %170 = vmatprep.subr.mxu0 0.0
    %171 = vmatpush1.msra.mxu0 0.0
    %172 = vmatprep.subr.mxu0 0.0
    %173 = vmatpush1.msra.mxu0 0.0
    %174 = vmatprep.subr.mxu0 0.0
    %175 = vmatpush1.msra.mxu0 0.0
    %176 = vmatprep.subr.mxu0 0.0
    %177 = vmatpush1.msra.mxu0 0.0
    %178 = vmatprep.subr.mxu0 0.0
    %179 = vmatpush1.msra.mxu0 0.0
    %180 = vmatprep.subr.mxu0 0.0
    %181 = vmatpush1.msra.mxu0 0.0
    %182 = vmatprep.subr.mxu0 0.0
    %183 = vmatpush1.msra.mxu0 0.0
    %184 = vmatprep.subr.mxu0 0.0
    %185 = vmatpush1.msra.mxu0 0.0
    %186 = vmatprep.subr.mxu0 0.0
    %187 = vmatpush1.msra.mxu0 0.0
    %188 = vmatprep.subr.mxu0 0.0
    %189 = vmatpush1.msra.mxu0 0.0
    %190 = vmatprep.subr.mxu0 0.0
    %191 = vmatpush1.msra.mxu0 0.0
    %192 = vmatprep.subr.mxu0 0.0
    %193 = vmatpush1.msra.mxu0 0.0
    %194 = vmatprep.subr.mxu0 0.0
    %195 = vmatpush1.msra.mxu0 0.0
    %196 = vmatprep.subr.mxu0 0.0
    %197 = vmatpush1.msra.mxu0 0.0
    %198 = vmatprep.subr.mxu0 0.0
    %199 = vmatpush1.msra.mxu0 0.0
    %200 = vmatprep.subr.mxu0 0.0
    %201 = vmatpush1.msra.mxu0 0.0
    %202 = vmatprep.subr.mxu0 0.0
    %203 = vmatpush1.msra.mxu0 0.0
    %204 = vmatprep.mubr.f32.mxu0 0.0
    %205 = vmatmul.mubr.f32.gmra.mrb[0].mxu0 %v138
    %v206 = vpop.f32.mrb[0].mxu0
    %v207 = vadd.f32 %v129, %v206
    %v208 = vpop.f32.mrb[0].mxu0
    %v209 = vadd.f32 %v133, %v208
    %210 = vdwg.mxu0
    %212 = vrot.lane.b32.xlu0 %v207, 32
    %v213 = vpop.permute.xlu0 %212
    %v215 = vadd.f32 %v207, %v213
    %v216 = vxor.u32 %v215, 2147483648
    %v217 = vmul.f32 %v216, 1.442695
    %v218 = vpow.pop %v217
    %v219 = vadd.f32 %v218, 1.0
    %v220 = vrcp.pop %v219
    %v221 = vmul.f32 1.0, %v220
    %223 = vrot.lane.b32.xlu0 %v209, 32
    %v224 = vpop.permute.xlu0 %223
    %v226 = vadd.f32 %v207, %v224
    %v227 = vxor.u32 %v226, 2147483648
    %v228 = vmul.f32 %v227, 1.442695
    %v229 = vpow.pop %v228
    %v230 = vadd.f32 %v229, 1.0
    %v231 = vrcp.pop %v230
    %v232 = vmul.f32 1.0, %v231
    %233 = vrot.lane.b32.xlu0 %v209, 96
    %v234 = vpop.permute.xlu0 %233
    %v236 = vmul.f32 %v221, %v234
    %238 = vrot.lane.b32.xlu0 %v236, 64
    %v239 = vpop.permute.xlu0 %238
    %v241 = vadd.f32 %v207, %v239
    %v242 = vtanh.pop %v241
    %v243 = vsub.f32 1.0, %v232
    %245 = vrot.lane.b32.xlu0 %v242, 96
    %v246 = vpop.permute.xlu0 %245
    %v248 = vmul.f32 %v243, %v246
    %v249 = vmul.f32 %v232, %v104
    %v250 = vadd.f32 %v248, %v249
    %252 = vrot.lane.b32.xlu0 %v250, 96
    %v253 = vpop.permute.xlu0 %252
    %vm255 = vcmask 257024
    %256 = vst.msk [vmem:[#allocation8] sm:$0xf] %vm255, %v253
    %v258 = vunpack.c.l.s4 1966171168
    %v259 = vunpack.c.0.s8 %v258
    %v260 = vlaneseq
    %v261 = vshrl.u32 %v260, 7
    %v262 = vsub.s32 %v259, %v261
    %v263 = vrot.slane %v250, %v262
    %v264 = vcombine.high %v263, %v263
    %v266 = vunpack.c.l.s4 1966171168
    %v267 = vunpack.c.0.s8 %v266
    %v268 = vlaneseq
    %v269 = vshrl.u32 %v268, 7
    %v270 = vsub.s32 %v267, %v269
    %v271 = vrot.slane %v263, %v270
    %v273 = vunpack.c.l.s4 1966171168
    %v274 = vunpack.c.0.s8 %v273
    %v275 = vlaneseq
    %v276 = vshrl.u32 %v275, 7
    %v277 = vsub.s32 %v274, %v276
    %v278 = vrot.slane %v264, %v277
    %v279 = vcombine.high %v271, %v271
    %v280 = vcombine.high %v278, %v278
    %v281 = vlaneseq
    %v282 = vshrl.u32 %v281, 7
    %v283 = vsub.s32 0, %v282
    %v284 = vrot.slane %v271, %v283
    %v285 = vlaneseq
    %v286 = vshrl.u32 %v285, 7
    %v287 = vsub.s32 0, %v286
    %v288 = vrot.slane %v278, %v287
    %v289 = vlaneseq
    %v290 = vshrl.u32 %v289, 7
    %v291 = vsub.s32 0, %v290
    %v292 = vrot.slane %v279, %v291
    %v293 = vlaneseq
    %v294 = vshrl.u32 %v293, 7
    %v295 = vsub.s32 0, %v294
    %v296 = vrot.slane %v280, %v295
    %297 = vrot.lane.b32.xlu0 %v284, 96
    %v298 = vpop.permute.xlu0 %297
    %299 = vrot.lane.b32.xlu0 %v288, 96
    %v300 = vpop.permute.xlu0 %299
    %301 = vrot.lane.b32.xlu0 %v292, 96
    %v302 = vpop.permute.xlu0 %301
    %303 = vrot.lane.b32.xlu0 %v296, 96
    %v304 = vpop.permute.xlu0 %303
    %313 = vrot.lane.b32.xlu0 %v71, 32
    %v314 = vpop.permute.xlu0 %313
    %315 = vrot.lane.b32.xlu0 %v72, 32
    %v316 = vpop.permute.xlu0 %315
    %317 = vrot.lane.b32.xlu0 %v73, 32
    %v318 = vpop.permute.xlu0 %317
    %319 = vrot.lane.b32.xlu0 %v74, 32
    %v320 = vpop.permute.xlu0 %319
    %v325 = vsel %vm106, %v298, %v314
    %v326 = vsel %vm106, %v300, %v316
    %v327 = vsel %vm106, %v302, %v318
    %v328 = vsel %vm106, %v304, %v320
    %v329 = vld [vmem:[%s6] sm:$0xff]
    %v330 = vld [vmem:[%s6 + $0x8] sm:$0xff]
    %v331 = vld [vmem:[%s6 + $0x10] sm:$0xff]
    %v332 = vld [vmem:[%s6 + $0x18] sm:$0xff]
    %v333 = vld [vmem:[%s6 + $0x20] sm:$0xff]
    %v334 = vld [vmem:[%s6 + $0x28] sm:$0xff]
    %v335 = vld [vmem:[%s6 + $0x30] sm:$0xff]
    %v336 = vld [vmem:[%s6 + $0x38] sm:$0xff]
    %v337 = vld [vmem:[%s7] sm:$0x1]
    %v339 = vlaneseq
    %v340 = vshrl.u32 %v339, 7
    %v341 = vsub.s32 0, %v340
    %v342 = vrot.slane %v337, %v341
    %v345 = vsel %vm136, %v325, 0
    %v348 = vsel %vm136, %v326, 0
    %v351 = vsel %vm136, %v327, 0
    %v354 = vsel %vm136, %v328, 0
    %356 = vmatprep.subr.mxu0 0.0
    %357 = vmatpush1.msra.mxu0 %v329
    %358 = vmatprep.subr.mxu0 0.0
    %359 = vmatpush1.msra.mxu0 %v330
    %360 = vmatprep.subr.mxu0 0.0
    %361 = vmatpush1.msra.mxu0 %v331
    %362 = vmatprep.subr.mxu0 0.0
    %363 = vmatpush1.msra.mxu0 %v332
    %364 = vmatprep.subr.mxu0 0.0
    %365 = vmatpush1.msra.mxu0 %v333
    %366 = vmatprep.subr.mxu0 0.0
    %367 = vmatpush1.msra.mxu0 %v334
    %368 = vmatprep.subr.mxu0 0.0
    %369 = vmatpush1.msra.mxu0 %v335
    %370 = vmatprep.subr.mxu0 0.0
    %371 = vmatpush1.msra.mxu0 %v336
    %372 = vmatprep.subr.mxu0 0.0
    %373 = vmatpush1.msra.mxu0 0.0
    %374 = vmatprep.subr.mxu0 0.0
    %375 = vmatpush1.msra.mxu0 0.0
    %376 = vmatprep.subr.mxu0 0.0
    %377 = vmatpush1.msra.mxu0 0.0
    %378 = vmatprep.subr.mxu0 0.0
    %379 = vmatpush1.msra.mxu0 0.0
    %380 = vmatprep.subr.mxu0 0.0
    %381 = vmatpush1.msra.mxu0 0.0
    %382 = vmatprep.subr.mxu0 0.0
    %383 = vmatpush1.msra.mxu0 0.0
    %384 = vmatprep.subr.mxu0 0.0
    %385 = vmatpush1.msra.mxu0 0.0
    %386 = vmatprep.subr.mxu0 0.0
    %387 = vmatpush1.msra.mxu0 0.0
    %388 = vmatprep.subr.mxu0 0.0
    %389 = vmatpush1.msra.mxu0 0.0
    %390 = vmatprep.subr.mxu0 0.0
    %391 = vmatpush1.msra.mxu0 0.0
    %392 = vmatprep.subr.mxu0 0.0
    %393 = vmatpush1.msra.mxu0 0.0
    %394 = vmatprep.subr.mxu0 0.0
    %395 = vmatpush1.msra.mxu0 0.0
    %396 = vmatprep.subr.mxu0 0.0
    %397 = vmatpush1.msra.mxu0 0.0
    %398 = vmatprep.subr.mxu0 0.0
    %399 = vmatpush1.msra.mxu0 0.0
    %400 = vmatprep.subr.mxu0 0.0
    %401 = vmatpush1.msra.mxu0 0.0
    %402 = vmatprep.subr.mxu0 0.0
    %403 = vmatpush1.msra.mxu0 0.0
    %404 = vmatprep.subr.mxu0 0.0
    %405 = vmatpush1.msra.mxu0 0.0
    %406 = vmatprep.subr.mxu0 0.0
    %407 = vmatpush1.msra.mxu0 0.0
    %408 = vmatprep.subr.mxu0 0.0
    %409 = vmatpush1.msra.mxu0 0.0
    %410 = vmatprep.subr.mxu0 0.0
    %411 = vmatpush1.msra.mxu0 0.0
    %412 = vmatprep.subr.mxu0 0.0
    %413 = vmatpush1.msra.mxu0 0.0
    %414 = vmatprep.subr.mxu0 0.0
    %415 = vmatpush1.msra.mxu0 0.0
    %416 = vmatprep.subr.mxu0 0.0
    %417 = vmatpush1.msra.mxu0 0.0
    %418 = vmatprep.subr.mxu0 0.0
    %419 = vmatpush1.msra.mxu0 0.0
    %420 = vmatprep.mubr.f32.mxu0 0.0
    %421 = vmatmul.mubr.f32.gmra.mrb[0].mxu0 %v345
    %v422 = vpop.f32.mrb[0].mxu0
    %v423 = vadd.f32 %v342, %v422
    %v424 = vpop.f32.mrb[0].mxu0
    %425 = vmatprep.mubr.f32.mxu0 0.0
    %426 = vmatmul.mubr.f32.gmra.mrb[0].mxu0 %v348
    %v427 = vpop.f32.mrb[0].mxu0
    %v428 = vadd.f32 %v342, %v427
    %v429 = vpop.f32.mrb[0].mxu0
    %430 = vmatprep.mubr.f32.mxu0 0.0
    %431 = vmatmul.mubr.f32.gmra.mrb[0].mxu0 %v351
    %v432 = vpop.f32.mrb[0].mxu0
    %v433 = vadd.f32 %v342, %v432
    %v434 = vpop.f32.mrb[0].mxu0
    %435 = vmatprep.mubr.f32.mxu0 0.0
    %436 = vmatmul.mubr.f32.gmra.mrb[0].mxu0 %v354
    %v437 = vpop.f32.mrb[0].mxu0
    %v438 = vadd.f32 %v342, %v437
    %v439 = vpop.f32.mrb[0].mxu0
    %440 = vdwg.mxu0
    %v441 = vtanh.pop %v423
    %v442 = vtanh.pop %v428
    %v443 = vtanh.pop %v433
    %v444 = vtanh.pop %v438
    %v445 = vld [vmem:[%s8] sm:$0xff]
    %v446 = vld [vmem:[%s8 + $0x8] sm:$0xff]
    %v447 = vld [vmem:[%s8 + $0x10] sm:$0xff]
    %v448 = vld [vmem:[%s8 + $0x18] sm:$0xff]
    %v450 = vsel %vm106, %v441, 0
    %v453 = vsel %vm106, %v442, 0
    %v456 = vsel %vm106, %v443, 0
    %v459 = vsel %vm106, %v444, 0
    %461 = vmatprep.subr.mxu0 0.0
    %462 = vmatpush1.msra.mxu0 %v445
    %463 = vmatprep.subr.mxu0 0.0
    %464 = vmatpush1.msra.mxu0 %v446
    %465 = vmatprep.subr.mxu0 0.0
    %466 = vmatpush1.msra.mxu0 %v447
    %467 = vmatprep.subr.mxu0 0.0
    %468 = vmatpush1.msra.mxu0 %v448
    %469 = vmatprep.subr.mxu0 0.0
    %470 = vmatpush1.msra.mxu0 0.0
    %471 = vmatprep.subr.mxu0 0.0
    %472 = vmatpush1.msra.mxu0 0.0
    %473 = vmatprep.subr.mxu0 0.0
    %474 = vmatpush1.msra.mxu0 0.0
    %475 = vmatprep.subr.mxu0 0.0
    %476 = vmatpush1.msra.mxu0 0.0
    %477 = vmatprep.subr.mxu0 0.0
    %478 = vmatpush1.msra.mxu0 0.0
    %479 = vmatprep.subr.mxu0 0.0
    %480 = vmatpush1.msra.mxu0 0.0
    %481 = vmatprep.subr.mxu0 0.0
    %482 = vmatpush1.msra.mxu0 0.0
    %483 = vmatprep.subr.mxu0 0.0
    %484 = vmatpush1.msra.mxu0 0.0
    %485 = vmatprep.subr.mxu0 0.0
    %486 = vmatpush1.msra.mxu0 0.0
    %487 = vmatprep.subr.mxu0 0.0
    %488 = vmatpush1.msra.mxu0 0.0
    %489 = vmatprep.subr.mxu0 0.0
    %490 = vmatpush1.msra.mxu0 0.0
    %491 = vmatprep.subr.mxu0 0.0
    %492 = vmatpush1.msra.mxu0 0.0
    %493 = vmatprep.subr.mxu0 0.0
    %494 = vmatpush1.msra.mxu0 0.0
    %495 = vmatprep.subr.mxu0 0.0
    %496 = vmatpush1.msra.mxu0 0.0
    %497 = vmatprep.subr.mxu0 0.0
    %498 = vmatpush1.msra.mxu0 0.0
    %499 = vmatprep.subr.mxu0 0.0
    %500 = vmatpush1.msra.mxu0 0.0
    %501 = vmatprep.subr.mxu0 0.0
    %502 = vmatpush1.msra.mxu0 0.0
    %503 = vmatprep.subr.mxu0 0.0
    %504 = vmatpush1.msra.mxu0 0.0
    %505 = vmatprep.subr.mxu0 0.0
    %506 = vmatpush1.msra.mxu0 0.0
    %507 = vmatprep.subr.mxu0 0.0
    %508 = vmatpush1.msra.mxu0 0.0
    %509 = vmatprep.subr.mxu0 0.0
    %510 = vmatpush1.msra.mxu0 0.0
    %511 = vmatprep.subr.mxu0 0.0
    %512 = vmatpush1.msra.mxu0 0.0
    %513 = vmatprep.subr.mxu0 0.0
    %514 = vmatpush1.msra.mxu0 0.0
    %515 = vmatprep.subr.mxu0 0.0
    %516 = vmatpush1.msra.mxu0 0.0
    %517 = vmatprep.subr.mxu0 0.0
    %518 = vmatpush1.msra.mxu0 0.0
    %519 = vmatprep.subr.mxu0 0.0
    %520 = vmatpush1.msra.mxu0 0.0
    %521 = vmatprep.subr.mxu0 0.0
    %522 = vmatpush1.msra.mxu0 0.0
    %523 = vmatprep.subr.mxu0 0.0
    %524 = vmatpush1.msra.mxu0 0.0
    %525 = vmatprep.mubr.f32.mxu0 0.0
    %526 = vmatmul.mubr.f32.gmra.mrb[0].mxu0 %v450
    %v527 = vpop.f32.mrb[0].mxu0
    %v528 = vadd.f32 0.0, %v527
    %v529 = vpop.f32.mrb[0].mxu0
    %530 = vmatprep.mubr.f32.mxu0 0.0
    %531 = vmatmul.mubr.f32.gmra.mrb[0].mxu0 %v453
    %v532 = vpop.f32.mrb[0].mxu0
    %v533 = vadd.f32 0.0, %v532
    %v534 = vpop.f32.mrb[0].mxu0
    %535 = vmatprep.mubr.f32.mxu0 0.0
    %536 = vmatmul.mubr.f32.gmra.mrb[0].mxu0 %v456
    %v537 = vpop.f32.mrb[0].mxu0
    %v538 = vadd.f32 0.0, %v537
    %v539 = vpop.f32.mrb[0].mxu0
    %540 = vmatprep.mubr.f32.mxu0 0.0
    %541 = vmatmul.mubr.f32.gmra.mrb[0].mxu0 %v459
    %v542 = vpop.f32.mrb[0].mxu0
    %v543 = vadd.f32 0.0, %v542
    %v544 = vpop.f32.mrb[0].mxu0
    %545 = vdwg.mxu0
    %550 = vset.pattern.permute.xlu0 0
    %551 = vperm.xlu0 %550, %v528
    %v552 = vpop.permute.xlu0 %551
    %553 = vset.pattern.permute.xlu0 0
    %554 = vperm.xlu0 %553, %v533
    %v555 = vpop.permute.xlu0 %554
    %556 = vset.pattern.permute.xlu0 0
    %557 = vperm.xlu0 %556, %v538
    %v558 = vpop.permute.xlu0 %557
    %559 = vset.pattern.permute.xlu0 0
    %560 = vperm.xlu0 %559, %v543
    %v561 = vpop.permute.xlu0 %560
    %v562 = vlaneseq
    %v563 = vand.u32 %v562, 127
    %v564 = vlaneseq
    %v565 = vshrl.u32 %v564, 7
    %v566 = vsub.s32 %v563, %v565
    %v567 = vrot.slane %v552, %v566
    %v568 = vlaneseq
    %v569 = vshrl.u32 %v568, 7
    %v570 = vsub.s32 %v563, %v569
    %v571 = vrot.slane %v555, %v570
    %v572 = vlaneseq
    %v573 = vshrl.u32 %v572, 7
    %v574 = vsub.s32 %v563, %v573
    %v575 = vrot.slane %v558, %v574
    %v576 = vlaneseq
    %v577 = vshrl.u32 %v576, 7
    %v578 = vsub.s32 %v563, %v577
    %v579 = vrot.slane %v561, %v578
    %vm580 = vcmask 1041409
    %v581 = vsel %vm580, %v571, %v567
    %vm582 = vcmask 1042434
    %v583 = vsel %vm582, %v575, %v581
    %vm584 = vcmask 1043459
    %v585 = vsel %vm584, %v579, %v583
    %vm587 = vcmask 60416
    %v588 = vsel %vm587, %v585, -inf
    %589 = vmax.xlane.f32.xlu0 %v588
    %v590 = vpop.xlane.xlu0 %589
    %v592 = vlaneseq
    %v593 = vshrl.u32 %v592, 7
    %v594 = vsub.s32 0, %v593
    %v595 = vrot.slane %v590, %v594
    %v596 = vlaneseq
    %v597 = vshrl.u32 %v596, 7
    %v598 = vsub.s32 1, %v597
    %v599 = vrot.slane %v590, %v598
    %v600 = vlaneseq
    %v601 = vshrl.u32 %v600, 7
    %v602 = vsub.s32 2, %v601
    %v603 = vrot.slane %v590, %v602
    %v604 = vlaneseq
    %v605 = vshrl.u32 %v604, 7
    %v606 = vsub.s32 3, %v605
    %v607 = vrot.slane %v590, %v606
    %v612 = vsub.f32 %v528, %v595
    %v613 = vsub.f32 %v533, %v599
    %v614 = vsub.f32 %v538, %v603
    %v615 = vsub.f32 %v543, %v607
    %v616 = vmul.f32 %v612, 1.442695
    %v617 = vpow.pop %v616
    %v618 = vmul.f32 %v613, 1.442695
    %v619 = vpow.pop %v618
    %v620 = vmul.f32 %v614, 1.442695
    %v621 = vpow.pop %v620
    %v622 = vmul.f32 %v615, 1.442695
    %v623 = vpow.pop %v622
    %628 = vset.pattern.permute.xlu0 0
    %629 = vperm.xlu0 %628, %v617
    %v630 = vpop.permute.xlu0 %629
    %631 = vset.pattern.permute.xlu0 0
    %632 = vperm.xlu0 %631, %v619
    %v633 = vpop.permute.xlu0 %632
    %634 = vset.pattern.permute.xlu0 0
    %635 = vperm.xlu0 %634, %v621
    %v636 = vpop.permute.xlu0 %635
    %637 = vset.pattern.permute.xlu0 0
    %638 = vperm.xlu0 %637, %v623
    %v639 = vpop.permute.xlu0 %638
    %v640 = vlaneseq
    %v641 = vshrl.u32 %v640, 7
    %v642 = vsub.s32 %v563, %v641
    %v643 = vrot.slane %v630, %v642
    %v644 = vlaneseq
    %v645 = vshrl.u32 %v644, 7
    %v646 = vsub.s32 %v563, %v645
    %v647 = vrot.slane %v633, %v646
    %v648 = vlaneseq
    %v649 = vshrl.u32 %v648, 7
    %v650 = vsub.s32 %v563, %v649
    %v651 = vrot.slane %v636, %v650
    %v652 = vlaneseq
    %v653 = vshrl.u32 %v652, 7
    %v654 = vsub.s32 %v563, %v653
    %v655 = vrot.slane %v639, %v654
    %v656 = vsel %vm580, %v647, %v643
    %v657 = vsel %vm582, %v651, %v656
    %v658 = vsel %vm584, %v655, %v657
    %v660 = vsel %vm587, %v658, 0.0
    %661 = vadd.xlane.f32.xlu0 %v660
    %v662 = vpop.xlane.xlu0 %661
    %v663 = vrcp.pop %v662
    %v664 = vmul.f32 %v662, %v663
    %v665 = vsub.f32 2.0, %v664
    %v666 = vmul.f32 %v663, %v665
    %v668 = vlaneseq
    %v669 = vshrl.u32 %v668, 7
    %v670 = vsub.s32 0, %v669
    %v671 = vrot.slane %v666, %v670
    %v672 = vlaneseq
    %v673 = vshrl.u32 %v672, 7
    %v674 = vsub.s32 1, %v673
    %v675 = vrot.slane %v666, %v674
    %v676 = vlaneseq
    %v677 = vshrl.u32 %v676, 7
    %v678 = vsub.s32 2, %v677
    %v679 = vrot.slane %v666, %v678
    %v680 = vlaneseq
    %v681 = vshrl.u32 %v680, 7
    %v682 = vsub.s32 3, %v681
    %v683 = vrot.slane %v666, %v682
    %v688 = vmul.f32 %v617, %v671
    %v689 = vmul.f32 %v619, %v675
    %v690 = vmul.f32 %v621, %v679
    %v691 = vmul.f32 %v623, %v683
    %696 = vset.pattern.permute.xlu0 0
    %697 = vperm.xlu0 %696, %v688
    %v698 = vpop.permute.xlu0 %697
    %699 = vset.pattern.permute.xlu0 0
    %700 = vperm.xlu0 %699, %v689
    %v701 = vpop.permute.xlu0 %700
    %702 = vset.pattern.permute.xlu0 0
    %703 = vperm.xlu0 %702, %v690
    %v704 = vpop.permute.xlu0 %703
    %705 = vset.pattern.permute.xlu0 0
    %706 = vperm.xlu0 %705, %v691
    %v707 = vpop.permute.xlu0 %706
    %v708 = vlaneseq
    %v709 = vshrl.u32 %v708, 7
    %v710 = vsub.s32 %v563, %v709
    %v711 = vrot.slane %v698, %v710
    %v712 = vlaneseq
    %v713 = vshrl.u32 %v712, 7
    %v714 = vsub.s32 %v563, %v713
    %v715 = vrot.slane %v701, %v714
    %v716 = vlaneseq
    %v717 = vshrl.u32 %v716, 7
    %v718 = vsub.s32 %v563, %v717
    %v719 = vrot.slane %v704, %v718
    %v720 = vlaneseq
    %v721 = vshrl.u32 %v720, 7
    %v722 = vsub.s32 %v563, %v721
    %v723 = vrot.slane %v707, %v722
    %v724 = vsel %vm580, %v715, %v711
    %v725 = vsel %vm582, %v719, %v724
    %v726 = vsel %vm584, %v723, %v725
    %728 = vst.msk [vmem:[#allocation10] sm:$0xf] %vm587, %v726
    %vm729 = vcmask 64512
    %v730 = vsel %vm729, %v711, 0
    %732 = vmatprep.subr.mxu0 0.0
    %733 = vmatpush1.msra.mxu0 %v71
    %734 = vmatprep.subr.mxu0 0.0
    %735 = vmatpush1.msra.mxu0 0.0
    %736 = vmatprep.subr.mxu0 0.0
    %737 = vmatpush1.msra.mxu0 0.0
    %738 = vmatprep.subr.mxu0 0.0
    %739 = vmatpush1.msra.mxu0 0.0
    %740 = vmatprep.subr.mxu0 0.0
    %741 = vmatpush1.msra.mxu0 0.0
    %742 = vmatprep.subr.mxu0 0.0
    %743 = vmatpush1.msra.mxu0 0.0
    %744 = vmatprep.subr.mxu0 0.0
    %745 = vmatpush1.msra.mxu0 0.0
    %746 = vmatprep.subr.mxu0 0.0
    %747 = vmatpush1.msra.mxu0 0.0
    %748 = vmatprep.subr.mxu0 0.0
    %749 = vmatpush1.msra.mxu0 0.0
    %750 = vmatprep.subr.mxu0 0.0
    %751 = vmatpush1.msra.mxu0 0.0
    %752 = vmatprep.subr.mxu0 0.0
    %753 = vmatpush1.msra.mxu0 0.0
    %754 = vmatprep.subr.mxu0 0.0
    %755 = vmatpush1.msra.mxu0 0.0
    %756 = vmatprep.subr.mxu0 0.0
    %757 = vmatpush1.msra.mxu0 0.0
    %758 = vmatprep.subr.mxu0 0.0
    %759 = vmatpush1.msra.mxu0 0.0
    %760 = vmatprep.subr.mxu0 0.0
    %761 = vmatpush1.msra.mxu0 0.0
    %762 = vmatprep.subr.mxu0 0.0
    %763 = vmatpush1.msra.mxu0 0.0
    %764 = vmatprep.subr.mxu0 0.0
    %765 = vmatpush1.msra.mxu0 0.0
    %766 = vmatprep.subr.mxu0 0.0
    %767 = vmatpush1.msra.mxu0 0.0
    %768 = vmatprep.subr.mxu0 0.0
    %769 = vmatpush1.msra.mxu0 0.0
    %770 = vmatprep.subr.mxu0 0.0
    %771 = vmatpush1.msra.mxu0 0.0
    %772 = vmatprep.subr.mxu0 0.0
    %773 = vmatpush1.msra.mxu0 0.0
    %774 = vmatprep.subr.mxu0 0.0
    %775 = vmatpush1.msra.mxu0 0.0
    %776 = vmatprep.subr.mxu0 0.0
    %777 = vmatpush1.msra.mxu0 0.0
    %778 = vmatprep.subr.mxu0 0.0
    %779 = vmatpush1.msra.mxu0 0.0
    %780 = vmatprep.subr.mxu0 0.0
    %781 = vmatpush1.msra.mxu0 0.0
    %782 = vmatprep.subr.mxu0 0.0
    %783 = vmatpush1.msra.mxu0 0.0
    %784 = vmatprep.subr.mxu0 0.0
    %785 = vmatpush1.msra.mxu0 0.0
    %786 = vmatprep.subr.mxu0 0.0
    %787 = vmatpush1.msra.mxu0 0.0
    %788 = vmatprep.subr.mxu0 0.0
    %789 = vmatpush1.msra.mxu0 0.0
    %790 = vmatprep.subr.mxu0 0.0
    %791 = vmatpush1.msra.mxu0 0.0
    %792 = vmatprep.subr.mxu0 0.0
    %793 = vmatpush1.msra.mxu0 0.0
    %794 = vmatprep.subr.mxu0 0.0
    %795 = vmatpush1.msra.mxu0 0.0
    %796 = vmatprep.mubr.f32.mxu0 0.0
    %797 = vmatmul.mubr.f32.gmra.mrb[0].mxu0 %v730
    %v798 = vpop.f32.mrb[0].mxu0
    %v799 = vadd.f32 0.0, %v798
    %v800 = vpop.f32.mrb[0].mxu0
    %801 = vdwg.mxu0
    %v802 = vsel %vm729, %v715, 0
    %804 = vmatprep.subr.mxu0 0.0
    %805 = vmatpush1.msra.mxu0 %v72
    %806 = vmatprep.subr.mxu0 0.0
    %807 = vmatpush1.msra.mxu0 0.0
    %808 = vmatprep.subr.mxu0 0.0
    %809 = vmatpush1.msra.mxu0 0.0
    %810 = vmatprep.subr.mxu0 0.0
    %811 = vmatpush1.msra.mxu0 0.0
    %812 = vmatprep.subr.mxu0 0.0
    %813 = vmatpush1.msra.mxu0 0.0
    %814 = vmatprep.subr.mxu0 0.0
    %815 = vmatpush1.msra.mxu0 0.0
    %816 = vmatprep.subr.mxu0 0.0
    %817 = vmatpush1.msra.mxu0 0.0
    %818 = vmatprep.subr.mxu0 0.0
    %819 = vmatpush1.msra.mxu0 0.0
    %820 = vmatprep.subr.mxu0 0.0
    %821 = vmatpush1.msra.mxu0 0.0
    %822 = vmatprep.subr.mxu0 0.0
    %823 = vmatpush1.msra.mxu0 0.0
    %824 = vmatprep.subr.mxu0 0.0
    %825 = vmatpush1.msra.mxu0 0.0
    %826 = vmatprep.subr.mxu0 0.0
    %827 = vmatpush1.msra.mxu0 0.0
    %828 = vmatprep.subr.mxu0 0.0
    %829 = vmatpush1.msra.mxu0 0.0
    %830 = vmatprep.subr.mxu0 0.0
    %831 = vmatpush1.msra.mxu0 0.0
    %832 = vmatprep.subr.mxu0 0.0
    %833 = vmatpush1.msra.mxu0 0.0
    %834 = vmatprep.subr.mxu0 0.0
    %835 = vmatpush1.msra.mxu0 0.0
    %836 = vmatprep.subr.mxu0 0.0
    %837 = vmatpush1.msra.mxu0 0.0
    %838 = vmatprep.subr.mxu0 0.0
    %839 = vmatpush1.msra.mxu0 0.0
    %840 = vmatprep.subr.mxu0 0.0
    %841 = vmatpush1.msra.mxu0 0.0
    %842 = vmatprep.subr.mxu0 0.0
    %843 = vmatpush1.msra.mxu0 0.0
    %844 = vmatprep.subr.mxu0 0.0
    %845 = vmatpush1.msra.mxu0 0.0
    %846 = vmatprep.subr.mxu0 0.0
    %847 = vmatpush1.msra.mxu0 0.0
    %848 = vmatprep.subr.mxu0 0.0
    %849 = vmatpush1.msra.mxu0 0.0
    %850 = vmatprep.subr.mxu0 0.0
    %851 = vmatpush1.msra.mxu0 0.0
    %852 = vmatprep.subr.mxu0 0.0
    %853 = vmatpush1.msra.mxu0 0.0
    %854 = vmatprep.subr.mxu0 0.0
    %855 = vmatpush1.msra.mxu0 0.0
    %856 = vmatprep.subr.mxu0 0.0
    %857 = vmatpush1.msra.mxu0 0.0
    %858 = vmatprep.subr.mxu0 0.0
    %859 = vmatpush1.msra.mxu0 0.0
    %860 = vmatprep.subr.mxu0 0.0
    %861 = vmatpush1.msra.mxu0 0.0
    %862 = vmatprep.subr.mxu0 0.0
    %863 = vmatpush1.msra.mxu0 0.0
    %864 = vmatprep.subr.mxu0 0.0
    %865 = vmatpush1.msra.mxu0 0.0
    %866 = vmatprep.subr.mxu0 0.0
    %867 = vmatpush1.msra.mxu0 0.0
    %868 = vmatprep.mubr.f32.mxu0 0.0
    %869 = vmatmul.mubr.f32.gmra.mrb[0].mxu0 %v802
    %v870 = vpop.f32.mrb[0].mxu0
    %v871 = vadd.f32 0.0, %v870
    %v872 = vpop.f32.mrb[0].mxu0
    %873 = vdwg.mxu0
    %v874 = vsel %vm729, %v719, 0
    %876 = vmatprep.subr.mxu0 0.0
    %877 = vmatpush1.msra.mxu0 %v73
    %878 = vmatprep.subr.mxu0 0.0
    %879 = vmatpush1.msra.mxu0 0.0
    %880 = vmatprep.subr.mxu0 0.0
    %881 = vmatpush1.msra.mxu0 0.0
    %882 = vmatprep.subr.mxu0 0.0
    %883 = vmatpush1.msra.mxu0 0.0
    %884 = vmatprep.subr.mxu0 0.0
    %885 = vmatpush1.msra.mxu0 0.0
    %886 = vmatprep.subr.mxu0 0.0
    %887 = vmatpush1.msra.mxu0 0.0
    %888 = vmatprep.subr.mxu0 0.0
    %889 = vmatpush1.msra.mxu0 0.0
    %890 = vmatprep.subr.mxu0 0.0
    %891 = vmatpush1.msra.mxu0 0.0
    %892 = vmatprep.subr.mxu0 0.0
    %893 = vmatpush1.msra.mxu0 0.0
    %894 = vmatprep.subr.mxu0 0.0
    %895 = vmatpush1.msra.mxu0 0.0
    %896 = vmatprep.subr.mxu0 0.0
    %897 = vmatpush1.msra.mxu0 0.0
    %898 = vmatprep.subr.mxu0 0.0
    %899 = vmatpush1.msra.mxu0 0.0
    %900 = vmatprep.subr.mxu0 0.0
    %901 = vmatpush1.msra.mxu0 0.0
    %902 = vmatprep.subr.mxu0 0.0
    %903 = vmatpush1.msra.mxu0 0.0
    %904 = vmatprep.subr.mxu0 0.0
    %905 = vmatpush1.msra.mxu0 0.0
    %906 = vmatprep.subr.mxu0 0.0
    %907 = vmatpush1.msra.mxu0 0.0
    %908 = vmatprep.subr.mxu0 0.0
    %909 = vmatpush1.msra.mxu0 0.0
    %910 = vmatprep.subr.mxu0 0.0
    %911 = vmatpush1.msra.mxu0 0.0
    %912 = vmatprep.subr.mxu0 0.0
    %913 = vmatpush1.msra.mxu0 0.0
    %914 = vmatprep.subr.mxu0 0.0
    %915 = vmatpush1.msra.mxu0 0.0
    %916 = vmatprep.subr.mxu0 0.0
    %917 = vmatpush1.msra.mxu0 0.0
    %918 = vmatprep.subr.mxu0 0.0
    %919 = vmatpush1.msra.mxu0 0.0
    %920 = vmatprep.subr.mxu0 0.0
    %921 = vmatpush1.msra.mxu0 0.0
    %922 = vmatprep.subr.mxu0 0.0
    %923 = vmatpush1.msra.mxu0 0.0
    %924 = vmatprep.subr.mxu0 0.0
    %925 = vmatpush1.msra.mxu0 0.0
    %926 = vmatprep.subr.mxu0 0.0
    %927 = vmatpush1.msra.mxu0 0.0
    %928 = vmatprep.subr.mxu0 0.0
    %929 = vmatpush1.msra.mxu0 0.0
    %930 = vmatprep.subr.mxu0 0.0
    %931 = vmatpush1.msra.mxu0 0.0
    %932 = vmatprep.subr.mxu0 0.0
    %933 = vmatpush1.msra.mxu0 0.0
    %934 = vmatprep.subr.mxu0 0.0
    %935 = vmatpush1.msra.mxu0 0.0
    %936 = vmatprep.subr.mxu0 0.0
    %937 = vmatpush1.msra.mxu0 0.0
    %938 = vmatprep.subr.mxu0 0.0
    %939 = vmatpush1.msra.mxu0 0.0
    %940 = vmatprep.mubr.f32.mxu0 0.0
    %941 = vmatmul.mubr.f32.gmra.mrb[0].mxu0 %v874
    %v942 = vpop.f32.mrb[0].mxu0
    %v943 = vadd.f32 0.0, %v942
    %v944 = vpop.f32.mrb[0].mxu0
    %945 = vdwg.mxu0
    %v946 = vsel %vm729, %v723, 0
    %948 = vmatprep.subr.mxu0 0.0
    %949 = vmatpush1.msra.mxu0 %v74
    %950 = vmatprep.subr.mxu0 0.0
    %951 = vmatpush1.msra.mxu0 0.0
    %952 = vmatprep.subr.mxu0 0.0
    %953 = vmatpush1.msra.mxu0 0.0
    %954 = vmatprep.subr.mxu0 0.0
    %955 = vmatpush1.msra.mxu0 0.0
    %956 = vmatprep.subr.mxu0 0.0
    %957 = vmatpush1.msra.mxu0 0.0
    %958 = vmatprep.subr.mxu0 0.0
    %959 = vmatpush1.msra.mxu0 0.0
    %960 = vmatprep.subr.mxu0 0.0
    %961 = vmatpush1.msra.mxu0 0.0
    %962 = vmatprep.subr.mxu0 0.0
    %963 = vmatpush1.msra.mxu0 0.0
    %964 = vmatprep.subr.mxu0 0.0
    %965 = vmatpush1.msra.mxu0 0.0
    %966 = vmatprep.subr.mxu0 0.0
    %967 = vmatpush1.msra.mxu0 0.0
    %968 = vmatprep.subr.mxu0 0.0
    %969 = vmatpush1.msra.mxu0 0.0
    %970 = vmatprep.subr.mxu0 0.0
    %971 = vmatpush1.msra.mxu0 0.0
    %972 = vmatprep.subr.mxu0 0.0
    %973 = vmatpush1.msra.mxu0 0.0
    %974 = vmatprep.subr.mxu0 0.0
    %975 = vmatpush1.msra.mxu0 0.0
    %976 = vmatprep.subr.mxu0 0.0
    %977 = vmatpush1.msra.mxu0 0.0
    %978 = vmatprep.subr.mxu0 0.0
    %979 = vmatpush1.msra.mxu0 0.0
    %980 = vmatprep.subr.mxu0 0.0
    %981 = vmatpush1.msra.mxu0 0.0
    %982 = vmatprep.subr.mxu0 0.0
    %983 = vmatpush1.msra.mxu0 0.0
    %984 = vmatprep.subr.mxu0 0.0
    %985 = vmatpush1.msra.mxu0 0.0
    %986 = vmatprep.subr.mxu0 0.0
    %987 = vmatpush1.msra.mxu0 0.0
    %988 = vmatprep.subr.mxu0 0.0
    %989 = vmatpush1.msra.mxu0 0.0
    %990 = vmatprep.subr.mxu0 0.0
    %991 = vmatpush1.msra.mxu0 0.0
    %992 = vmatprep.subr.mxu0 0.0
    %993 = vmatpush1.msra.mxu0 0.0
    %994 = vmatprep.subr.mxu0 0.0
    %995 = vmatpush1.msra.mxu0 0.0
    %996 = vmatprep.subr.mxu0 0.0
    %997 = vmatpush1.msra.mxu0 0.0
    %998 = vmatprep.subr.mxu0 0.0
    %999 = vmatpush1.msra.mxu0 0.0
    %1000 = vmatprep.subr.mxu0 0.0
    %1001 = vmatpush1.msra.mxu0 0.0
    %1002 = vmatprep.subr.mxu0 0.0
    %1003 = vmatpush1.msra.mxu0 0.0
    %1004 = vmatprep.subr.mxu0 0.0
    %1005 = vmatpush1.msra.mxu0 0.0
    %1006 = vmatprep.subr.mxu0 0.0
    %1007 = vmatpush1.msra.mxu0 0.0
    %1008 = vmatprep.subr.mxu0 0.0
    %1009 = vmatpush1.msra.mxu0 0.0
    %1010 = vmatprep.subr.mxu0 0.0
    %1011 = vmatpush1.msra.mxu0 0.0
    %1012 = vmatprep.mubr.f32.mxu0 0.0
    %1013 = vmatmul.mubr.f32.gmra.mrb[0].mxu0 %v946
    %v1014 = vpop.f32.mrb[0].mxu0
    %v1015 = vadd.f32 0.0, %v1014
    %v1016 = vpop.f32.mrb[0].mxu0
    %1017 = vdwg.mxu0
    %v1022 = vrot.slane %v871, 7
    %v1023 = vsel %vm580, %v1022, %v799
    %v1024 = vrot.slane %v943, 6
    %v1025 = vsel %vm582, %v1024, %v1023
    %v1026 = vrot.slane %v1015, 5
    %v1027 = vsel %vm584, %v1026, %v1025
    %1028 = vrot.lane.b32.xlu0 %v1027, 32
    %v1029 = vpop.permute.xlu0 %1028
    %v1031 = vsel %vm106, %v253, %v1029
    %v1032 = vld [vmem:[%s9] sm:$0xff]
    %v1033 = vld [vmem:[%s9 + $0x8] sm:$0xff]
    %v1034 = vld [vmem:[%s9 + $0x10] sm:$0xff]
    %v1035 = vld [vmem:[%s9 + $0x18] sm:$0xff]
    %v1036 = vld [vmem:[%s9 + $0x20] sm:$0xff]
    %v1037 = vld [vmem:[%s9 + $0x28] sm:$0xff]
    %v1038 = vld [vmem:[%s9 + $0x30] sm:$0xff]
    %v1039 = vld [vmem:[%s9 + $0x38] sm:$0xff]
    %v1040 = vld [vmem:[%s10] sm:$0x1]
    %v1042 = vlaneseq
    %v1043 = vshrl.u32 %v1042, 7
    %v1044 = vsub.s32 0, %v1043
    %v1045 = vrot.slane %v1040, %v1044
    %v1048 = vsel %vm136, %v1031, 0
    %1050 = vmatprep.subr.mxu0 0.0
    %1051 = vmatpush1.msra.mxu0 %v1032
    %1052 = vmatprep.subr.mxu0 0.0
    %1053 = vmatpush1.msra.mxu0 %v1033
    %1054 = vmatprep.subr.mxu0 0.0
    %1055 = vmatpush1.msra.mxu0 %v1034
    %1056 = vmatprep.subr.mxu0 0.0
    %1057 = vmatpush1.msra.mxu0 %v1035
    %1058 = vmatprep.subr.mxu0 0.0
    %1059 = vmatpush1.msra.mxu0 %v1036
    %1060 = vmatprep.subr.mxu0 0.0
    %1061 = vmatpush1.msra.mxu0 %v1037
    %1062 = vmatprep.subr.mxu0 0.0
    %1063 = vmatpush1.msra.mxu0 %v1038
    %1064 = vmatprep.subr.mxu0 0.0
    %1065 = vmatpush1.msra.mxu0 %v1039
    %1066 = vmatprep.subr.mxu0 0.0
    %1067 = vmatpush1.msra.mxu0 0.0
    %1068 = vmatprep.subr.mxu0 0.0
    %1069 = vmatpush1.msra.mxu0 0.0
    %1070 = vmatprep.subr.mxu0 0.0
    %1071 = vmatpush1.msra.mxu0 0.0
    %1072 = vmatprep.subr.mxu0 0.0
    %1073 = vmatpush1.msra.mxu0 0.0
    %1074 = vmatprep.subr.mxu0 0.0
    %1075 = vmatpush1.msra.mxu0 0.0
    %1076 = vmatprep.subr.mxu0 0.0
    %1077 = vmatpush1.msra.mxu0 0.0
    %1078 = vmatprep.subr.mxu0 0.0
    %1079 = vmatpush1.msra.mxu0 0.0
    %1080 = vmatprep.subr.mxu0 0.0
    %1081 = vmatpush1.msra.mxu0 0.0
    %1082 = vmatprep.subr.mxu0 0.0
    %1083 = vmatpush1.msra.mxu0 0.0
    %1084 = vmatprep.subr.mxu0 0.0
    %1085 = vmatpush1.msra.mxu0 0.0
    %1086 = vmatprep.subr.mxu0 0.0
    %1087 = vmatpush1.msra.mxu0 0.0
    %1088 = vmatprep.subr.mxu0 0.0
    %1089 = vmatpush1.msra.mxu0 0.0
    %1090 = vmatprep.subr.mxu0 0.0
    %1091 = vmatpush1.msra.mxu0 0.0
    %1092 = vmatprep.subr.mxu0 0.0
    %1093 = vmatpush1.msra.mxu0 0.0
    %1094 = vmatprep.subr.mxu0 0.0
    %1095 = vmatpush1.msra.mxu0 0.0
    %1096 = vmatprep.subr.mxu0 0.0
    %1097 = vmatpush1.msra.mxu0 0.0
    %1098 = vmatprep.subr.mxu0 0.0
    %1099 = vmatpush1.msra.mxu0 0.0
    %1100 = vmatprep.subr.mxu0 0.0
    %1101 = vmatpush1.msra.mxu0 0.0
    %1102 = vmatprep.subr.mxu0 0.0
    %1103 = vmatpush1.msra.mxu0 0.0
    %1104 = vmatprep.subr.mxu0 0.0
    %1105 = vmatpush1.msra.mxu0 0.0
    %1106 = vmatprep.subr.mxu0 0.0
    %1107 = vmatpush1.msra.mxu0 0.0
    %1108 = vmatprep.subr.mxu0 0.0
    %1109 = vmatpush1.msra.mxu0 0.0
    %1110 = vmatprep.subr.mxu0 0.0
    %1111 = vmatpush1.msra.mxu0 0.0
    %1112 = vmatprep.subr.mxu0 0.0
    %1113 = vmatpush1.msra.mxu0 0.0
    %1114 = vmatprep.mubr.f32.mxu0 0.0
    %1115 = vmatmul.mubr.f32.gmra.mrb[0].mxu0 %v1048
    %v1116 = vpop.f32.mrb[0].mxu0
    %v1117 = vadd.f32 %v1045, %v1116
    %v1118 = vpop.f32.mrb[0].mxu0
    %1119 = vdwg.mxu0
    %vm1120 = vcmask 519168
    %1121 = vst.msk [vmem:[#allocation7] sm:$0xf] %vm1120, %v1117
    // Predicated region
    $region54: #{tpu_custom_call.1} parent=1 // pred_check
      _
    $region55: #{tpu_custom_call.1} parent=1 // pred_check_branch
      %1123 = sbr.rel (0) target = $region57
    $region56: #{tpu_custom_call.1} parent=1 // pred_region
      %s1125 = ssub.s32 64, 64
      %1126 = vsyncadd [#allocation4], %s1125
      %s1128 = sshll.u32 [#allocation7], 4
      %s1129 = int_to_ptr.vmem [resolvable:$true] %s1128
      %1131 = dma.vmem_to_hbm [thread:$0]  %s1129, 64, %s11, [#allocation4]
    $region57: #{tpu_custom_call.1} parent=1 // pred_fallthru
      _
    // Predicated region
    $region58: #{tpu_custom_call.1} parent=1 // pred_check
      _
    $region59: #{tpu_custom_call.1} parent=1 // pred_check_branch
      %1133 = sbr.rel (0) target = $region61
    $region60: #{tpu_custom_call.1} parent=1 // pred_region
      %s1135 = ssub.s32 64, 64
      %1136 = vsyncadd [#allocation9], %s1135
      %s1138 = sshll.u32 [#allocation8], 4
      %s1139 = int_to_ptr.vmem [resolvable:$true] %s1138
      %1141 = dma.vmem_to_hbm [thread:$0]  %s1139, 64, %s12, [#allocation9]
    $region61: #{tpu_custom_call.1} parent=1 // pred_fallthru
      _
    // Predicated region
    $region62: #{tpu_custom_call.1} parent=1 // pred_check
      _
    $region63: #{tpu_custom_call.1} parent=1 // pred_check_branch
      %1143 = sbr.rel (0) target = $region65
    $region64: #{tpu_custom_call.1} parent=1 // pred_region
      %s1145 = ssub.s32 64, 64
      %1146 = vsyncadd [#allocation9], %s1145
      %s1148 = sshll.u32 [#allocation10], 4
      %s1149 = int_to_ptr.vmem [resolvable:$true] %s1148
      %1151 = dma.vmem_to_hbm [thread:$0]  %s1149, 64, %s13, [#allocation9]
    $region65: #{tpu_custom_call.1} parent=1 // pred_fallthru
      _
    // Predicated region
    $region66: #{tpu_custom_call.1} parent=1 // pred_check
      _
    $region67: #{tpu_custom_call.1} parent=1 // pred_check_branch
      %1153 = sbr.rel (0) target = $region69
    $region68: #{tpu_custom_call.1} parent=1 // pred_region
      %1154 = dma.done [#allocation4], 64
    $region69: #{tpu_custom_call.1} parent=1 // pred_fallthru
      _
    // Predicated region
    $region70: #{tpu_custom_call.1} parent=1 // pred_check
      _
    $region71: #{tpu_custom_call.1} parent=1 // pred_check_branch
      %1156 = sbr.rel (0) target = $region73
    $region72: #{tpu_custom_call.1} parent=1 // pred_region
      %1157 = dma.done [#allocation9], 64
    $region73: #{tpu_custom_call.1} parent=1 // pred_fallthru
      _
    // Predicated region
    $region74: #{tpu_custom_call.1} parent=1 // pred_check
      _
    $region75: #{tpu_custom_call.1} parent=1 // pred_check_branch
      %1159 = sbr.rel (0) target = $region77
    $region76: #{tpu_custom_call.1} parent=1 // pred_region
      %1160 = dma.done [#allocation9], 64
    $region77: #{tpu_custom_call.1} parent=1 // pred_fallthru
      _
    %1161 = vsyncpa [#allocation3], 1
    %1162 = vsyncpa [#allocation4], 1
    %1163 = vsyncpa [#allocation9], 1
    %1164 = vsyncpa [#allocation5], 1

</llo_original>
